<compile_context>
chip_gen: v7x
topology: tpu7x:2x2x1
jax: 0.10.0
libtpu: 0.0.40
codegen_flags: <defaults>
</compile_context>

<pallas_src>
import jax
import jax.numpy as jnp
from jax.experimental import pallas as pl
from jax.experimental.pallas import tpu as pltpu


def _round_up(a: int, b: int) -> int:
    return ((a + b - 1) // b) * b


def _one_layer_kernel(b_ref, x_ref, w_ref, o_ref):
    # b_ref: (1,)           f32 SMEM  (bias, scalar path)
    # x_ref: (block_b, F)   f32 VMEM  (streamed batch tile, double-buffered)
    # w_ref: (1, F)         f32 VMEM  (resident: constant index_map)
    # o_ref: (1, 1, block_b) f32 VMEM (lane-dense output tile)
    x = x_ref[...]
    w = w_ref[...]
    b = b_ref[0]

    # Linear(F -> 1): elementwise multiply on the VPU + lane reduction on the
    # XLU (exact f32, no MXU pass wasted on a single output column).  Mosaic
    # masks the padding lanes when F is not a multiple of 128.
    row = jnp.sum(x * w, axis=-1)            # (block_b,) f32

    # Sigmoid on the EUP; store lane-dense (one sublane->lane relayout on the
    # XLU) so per-step output stores/DMA are unmasked and contiguous.
    o_ref[...] = jax.nn.sigmoid(row + b)[None, None, :].astype(o_ref.dtype)


def _choose_block_b(B: int, F: int) -> int:
    """Batch-tile rows: big enough to amortize per-step overhead, small enough
    to fit the VMEM budget, and leaving >= 2 grid steps for v7x's 2 TCs."""
    f_pad = _round_up(F, 128)                       # VMEM lane-pads the minor dim
    traffic_rows = (4 * 1024 * 1024) // (F * 4)     # ~4 MiB HBM traffic per step
    vmem_rows = (8 * 1024 * 1024) // (f_pad * 4)    # <= ~8 MiB VMEM per x buffer
    cap = max(8, (min(traffic_rows, vmem_rows) // 8) * 8)
    cap = min(cap, 32768)
    # v7x megacore: moderate batches should still yield >= 2 grid steps so the
    # "parallel" axis can be sharded across both TensorCores.
    rows_for_two_steps = _round_up(pl.cdiv(B, 2), 8)
    return max(8, min(cap, rows_for_two_steps))


def _vmem_bytes_estimate(block_b: int, F: int) -> int:
    f_pad = _round_up(F, 128)
    x_bytes = 2 * block_b * f_pad * 4                    # double-buffered x tiles
    w_bytes = 2 * 8 * f_pad * 4                          # resident weight row
    o_bytes = 2 * 8 * _round_up(block_b, 128) * 4        # lane-dense output tiles
    return x_bytes + w_bytes + o_bytes


def one_layer_nn(x, weight, bias, *, block_b: int | None = None):
    """Forward pass of OneLayerNN: sigmoid(x @ weight.T + bias).

    x:      (B, F) float32
    weight: (1, F) float32   (PyTorch nn.Linear convention)
    bias:   (1,)   float32
    returns (B, 1) float32
    """
    B, F = x.shape
    x = x.astype(jnp.float32)
    weight = jnp.asarray(weight, jnp.float32).reshape(1, F)
    bias = jnp.asarray(bias, jnp.float32).reshape(1)

    if block_b is None:
        block_b = _choose_block_b(B, F)
    block_b = max(8, (block_b // 8) * 8)

    grid_b = pl.cdiv(B, block_b)

    # Explicit scoped-VMEM limit: covers the larger tiles on v5e's 16 MiB
    # default, stays <= 48 MiB so it always fits v7x's 64 MiB/TC physical.
    vmem_limit = int(min(48 * 1024 * 1024,
                         max(_vmem_bytes_estimate(block_b, F) + (8 << 20),
                             16 << 20)))

    out = pl.pallas_call(
        _one_layer_kernel,
        out_shape=jax.ShapeDtypeStruct((grid_b, 1, block_b), jnp.float32),
        grid_spec=pl.GridSpec(
            grid=(grid_b,),
            in_specs=[
                # bias: single scalar on the scalar path (SMEM), no VMEM tile.
                pl.BlockSpec(memory_space=pltpu.MemorySpace.SMEM),
                # x: streamed batch tiles (full, unpadded F in the last dim),
                # double-buffered by Pallas; ragged last tile handled by Pallas.
                pl.BlockSpec((block_b, F), lambda i: (i, 0)),
                # weight: constant block index -> stays resident in VMEM.
                pl.BlockSpec((1, F), lambda i: (0, 0)),
            ],
            # lane-dense output slab per grid step.
            out_specs=pl.BlockSpec((1, 1, block_b), lambda i: (i, 0, 0)),
        ),
        compiler_params=pltpu.CompilerParams(
            # Batch tiles are independent -> shard across TCs on v7x; no-op on
            # single-TC v5e/v6e.
            dimension_semantics=("parallel",),
            vmem_limit_bytes=vmem_limit,
        ),
    )(bias, x, weight)

    # Rows >= B in the ragged last tile are uninitialized garbage by design
    # (per-row garbage-in/garbage-out) and are sliced off here.  Do NOT "fix"
    # this by reintroducing a batch jnp.pad copy of x.
    return out.reshape(grid_b * block_b, 1)[:B]


if __name__ == "__main__":
    key = jax.random.PRNGKey(0)
    kx, kw, kb = jax.random.split(key, 3)

    batch, features = 8, 32  # small tabular shapes; X_train.shape[1] -> features

    x = jax.random.normal(kx, (batch, features), dtype=jnp.float32)
    # Deterministic parameter init (mimics nn.Linear uniform init bounds).
    bound = 1.0 / (features ** 0.5)
    weight = jax.random.uniform(kw, (1, features), jnp.float32, -bound, bound)
    bias = jax.random.uniform(kb, (1,), jnp.float32, -bound, bound)

    out = one_layer_nn(x, weight, bias)
    out = jax.block_until_ready(out)

    # Reference check in plain JAX.
    ref = jax.nn.sigmoid(x @ weight.T + bias)
    assert out.shape == (batch, 1)
    assert jnp.allclose(out, ref, atol=1e-5, rtol=1e-5)

    print("KERNEL_OK")
</pallas_src>

<mosaic_0001>
module attributes {stable_mosaic.version = 11 : i64} {
  func.func @_one_layer_kernel(%arg0: i32, %arg1: memref<1xf32, #tpu.memory_space<smem>>, %arg2: memref<8x32xf32, #tpu.memory_space<vmem>>, %arg3: memref<1x32xf32, #tpu.memory_space<vmem>>, %arg4: memref<1x1x8xf32, #tpu.memory_space<vmem>>) attributes {dimension_semantics = [#tpu.dimension_semantics<parallel>], iteration_bounds = array<i64: 1>, scalar_prefetch = 0 : i64, scratch_operands = 0 : i64, tpu.core_type = #tpu.core_type<tc>, window_params = [{transform_indices = @transform_0, window_bounds = array<i64: 1>}, {transform_indices = @transform_1, window_bounds = array<i64: 8, 32>}, {pipeline_mode = #tpu.pipeline_mode<synchronous>, transform_indices = @transform_2, window_bounds = array<i64: 1, 32>}, {transform_indices = @transform_3, window_bounds = array<i64: 1, 1, 8>}]} {
    %c0 = arith.constant 0 : index
    %c0_0 = arith.constant 0 : index
    %0 = vector.load %arg2[%c0, %c0_0] : memref<8x32xf32, #tpu.memory_space<vmem>>, vector<8x32xf32>
    %c0_1 = arith.constant 0 : index
    %c0_2 = arith.constant 0 : index
    %1 = vector.load %arg3[%c0_1, %c0_2] : memref<1x32xf32, #tpu.memory_space<vmem>>, vector<1x32xf32>
    %c0_3 = arith.constant 0 : index
    %2 = memref.load %arg1[%c0_3] : memref<1xf32, #tpu.memory_space<smem>>
    %3 = vector.broadcast %1 : vector<1x32xf32> to vector<8x32xf32>
    %4 = arith.mulf %0, %3 : vector<8x32xf32>
    %cst = arith.constant dense<0.000000e+00> : vector<8xf32>
    %5 = vector.multi_reduction <add>, %4, %cst [1] : vector<8x32xf32> to vector<8xf32>
    %6 = vector.broadcast %2 : f32 to vector<8xf32>
    %7 = arith.addf %5, %6 : vector<8xf32>
    %8 = arith.negf %7 : vector<8xf32>
    %9 = math.exp %8 : vector<8xf32>
    %cst_4 = arith.constant 1.000000e+00 : f32
    %10 = vector.broadcast %cst_4 : f32 to vector<8xf32>
    %11 = arith.addf %10, %9 : vector<8xf32>
    %12 = arith.divf %10, %11 : vector<8xf32>
    %13 = vector.shape_cast %12 : vector<8xf32> to vector<1x1x8xf32>
    %c0_5 = arith.constant 0 : index
    %c0_6 = arith.constant 0 : index
    %c0_7 = arith.constant 0 : index
    %14 = vector.load %arg4[%c0_5, %c0_6, %c0_7] : memref<1x1x8xf32, #tpu.memory_space<vmem>>, vector<1x1x8xf32>
    tpu.vector_store %arg4[%c0_5, %c0_6, %c0_7], %13 {strides = array<i32>} : memref<1x1x8xf32, #tpu.memory_space<vmem>>, vector<1x1x8xf32>,
    return
  }
  func.func @transform_0(%arg0: i32) -> i32 {
    %c0_i32 = arith.constant 0 : i32
    %c0_i32_0 = arith.constant 0 : i32
    return %c0_i32 : i32
  }
  func.func @transform_1(%arg0: i32) -> (i32, i32) {
    %c0_i32 = arith.constant 0 : i32
    %c0_i32_0 = arith.constant 0 : i32
    return %arg0, %c0_i32 : i32, i32
  }
  func.func @transform_2(%arg0: i32) -> (i32, i32) {
    %c0_i32 = arith.constant 0 : i32
    %c0_i32_0 = arith.constant 0 : i32
    %c0_i32_1 = arith.constant 0 : i32
    return %c0_i32, %c0_i32_0 : i32, i32
  }
  func.func @transform_3(%arg0: i32) -> (i32, i32, i32) {
    %c0_i32 = arith.constant 0 : i32
    %c0_i32_0 = arith.constant 0 : i32
    %c0_i32_1 = arith.constant 0 : i32
    return %arg0, %c0_i32, %c0_i32_0 : i32, i32, i32
  }
}

</mosaic_0001>

<llo_original>
// kernel: tpu_custom_call.1
$region0: #{tpu_custom_call.1}
  #allocation0 [shape = 'u32[]', space=smem, size = 0x4, offset = 0x4, fixed_abs, tag = 'smem constant byte address 0x4 - core index']
  #allocation1 [shape = 'u32[144,128]{1,0:T(1,128)}', space=vmem, size = 0x12000, scoped, tag = 'internal scratch']
  #allocation2 [shape = 'f32[1]{0:T(128)S(6)}', space=smem, size = 0x200, scoped, tag = 'scoped memory for tpu_custom_call.1']
  %s0 = inlined_call_operand.<no memory space> [shape: f32[1], index: 0, kind: input, shape index: {}]
  %s1 = inlined_call_operand.hbm [shape: f32[8,32], index: 1, kind: input, shape index: {}]
  %s2 = inlined_call_operand.vmem [shape: f32[1,32], index: 2, kind: input, shape index: {}]
  %s3 = inlined_call_operand.hbm [shape: f32[1,1,8], index: 3, kind: output, shape index: {}]
  %s4 = sld [smem:[#allocation0]]
  $region26: #{tpu_custom_call.1} parent=0
    _
  %s6 = ssub.s32 1, %s4
  %s7 = scalar_select 0, %s6, %s4
  %8 = sst [smem:[#allocation2]] %s0
  $region1: #{tpu_custom_call.1} parent=0
    #allocation3 [shape = 'u8[4096]{0}', space=vmem, size = 0x1000, scoped, tag = 'input window, operand 1, single buffered']
    #allocation4 [shape = 's32[1]{0}', space=sflag, size = 0x4, scoped, tag = 'scoped memory for tpu_custom_call.1']
    #allocation5 [shape = 's32[1]{0}', space=sflag, size = 0x4, scoped, tag = 'scoped memory for tpu_custom_call.1']
    #allocation6 [shape = 'u8[512]{0}', space=vmem, size = 0x400, scoped, tag = 'output window, operand 0, single buffered']
    %9 = vsyncpa [#allocation4], 0
    %10 = vsyncpa [#allocation5], 0
    // Predicated region
    $region2: #{tpu_custom_call.1} parent=1 // pred_check
      _
    $region3: #{tpu_custom_call.1} parent=1 // pred_check_branch
      %12 = sbr.rel (0) target = $region5
    $region4: #{tpu_custom_call.1} parent=1 // pred_region
      _
    $region5: #{tpu_custom_call.1} parent=1 // pred_fallthru
      _
    // Predicated region
    $region6: #{tpu_custom_call.1} parent=1 // pred_check
      _
    $region7: #{tpu_custom_call.1} parent=1 // pred_check_branch
      %14 = sbr.rel (0) target = $region9
    $region8: #{tpu_custom_call.1} parent=1 // pred_region
      %s16 = ssub.s32 128, 128
      %17 = vsyncadd [#allocation4], %s16
      %s19 = sshll.u32 [#allocation3], 4
      %s20 = int_to_ptr.vmem [resolvable:$true] %s19
      %22 = dma.hbm_to_vmem [thread:$0]  %s1, 128, %s20, [#allocation4]
    $region9: #{tpu_custom_call.1} parent=1 // pred_fallthru
      _
    // Predicated region
    $region10: #{tpu_custom_call.1} parent=1 // pred_check
      _
    $region11: #{tpu_custom_call.1} parent=1 // pred_check_branch
      %24 = sbr.rel (0) target = $region13
    $region12: #{tpu_custom_call.1} parent=1 // pred_region
      _
    $region13: #{tpu_custom_call.1} parent=1 // pred_fallthru
      _
    // Predicated region
    $region14: #{tpu_custom_call.1} parent=1 // pred_check
      _
    $region15: #{tpu_custom_call.1} parent=1 // pred_check_branch
      %26 = sbr.rel (0) target = $region17
    $region16: #{tpu_custom_call.1} parent=1 // pred_region
      %27 = dma.done [#allocation4], 128
    $region17: #{tpu_custom_call.1} parent=1 // pred_fallthru
      _
    %v28 = vld [vmem:[#allocation3] sm:$0xff]
    %v29 = vld [vmem:[%s2] sm:$0x1]
    %s30 = sld [smem:[#allocation2]]
    %v32 = vlaneseq
    %v33 = vshrl.u32 %v32, 7
    %v34 = vsub.s32 0, %v33
    %v35 = vrot.slane %v29, %v34
    %v37 = vmul.f32 %v28, %v35
    %vm38 = vcmask 261120
    %v39 = vsel %vm38, %v37, 0.0
    %40 = vadd.xlane.f32.xlu0 %v39
    %v41 = vpop.xlane.xlu0 %40
    %v42 = vstv %s30
    %v43 = vadd.f32 %v41, %v42
    %v44 = vxor.u32 %v43, 2147483648
    %v45 = vmul.f32 %v44, 1.442695
    %v46 = vpow.pop %v45
    %v47 = vadd.f32 %v46, 1.0
    %v48 = vrcp.pop %v47
    %v49 = vmul.f32 1.0, %v48
    %v51 = vlaneseq
    %v52 = vand.u32 %v51, 127
    %v53 = vlaneseq
    %v54 = vshrl.u32 %v53, 7
    %v55 = vsub.s32 %v52, %v54
    %v56 = vrot.slane %v49, %v55
    %vm58 = vcmask 57344
    %59 = vst.msk [vmem:[#allocation6] sm:$0x1] %vm58, %v56
    // Predicated region
    $region18: #{tpu_custom_call.1} parent=1 // pred_check
      _
    $region19: #{tpu_custom_call.1} parent=1 // pred_check_branch
      %61 = sbr.rel (0) target = $region21
    $region20: #{tpu_custom_call.1} parent=1 // pred_region
      %s63 = ssub.s32 16, 16
      %64 = vsyncadd [#allocation5], %s63
      %s66 = sshll.u32 [#allocation6], 4
      %s67 = int_to_ptr.vmem [resolvable:$true] %s66
      %69 = dma.vmem_to_hbm [thread:$0]  %s67, 16, %s3, [#allocation5]
    $region21: #{tpu_custom_call.1} parent=1 // pred_fallthru
      _
    // Predicated region
    $region22: #{tpu_custom_call.1} parent=1 // pred_check
      _
    $region23: #{tpu_custom_call.1} parent=1 // pred_check_branch
      %71 = sbr.rel (0) target = $region25
    $region24: #{tpu_custom_call.1} parent=1 // pred_region
      %72 = dma.done [#allocation5], 16
    $region25: #{tpu_custom_call.1} parent=1 // pred_fallthru
      _
    %73 = vsyncpa [#allocation4], 1
    %74 = vsyncpa [#allocation5], 1

</llo_original>
